<compile_context>
chip_gen: v5e
topology: v5e:2x2
jax: 0.10.0
libtpu: 0.0.40
codegen_flags: <defaults>
</compile_context>

<pallas_src>
import functools

import jax
import jax.numpy as jnp
from jax.experimental import pallas as pl
from jax.experimental.pallas import tpu as pltpu


def _round_up(n, m):
    return ((n + m - 1) // m) * m


def _device_kind():
    try:
        return jax.devices()[0].device_kind.lower()
    except Exception:
        return ""


def _layer3_on_mxu():
    # v5e: 3 heterogeneous XLUs + 128-wide MXU w/ result FIFO -> keep the VPU multiply +
    # cross-sublane reduce.  v6e/v7x: only 2 XLUs and a 256-wide MXU with huge slack
    # (v7x MRB even accumulates in place) -> route layer 3 through the MXU.
    return "v5" not in _device_kind()


def _vmem_budget_bytes():
    try:
        phys = int(pltpu.get_tpu_info().vmem_capacity_bytes)
    except Exception:
        phys = 64 << 20  # conservative (v7x-sized) fallback
    # Never request all of physical VMEM: leave headroom for Mosaic internal scratch.
    # -> ~48 MiB on v7x (64 MiB phys); capped at 100 MiB on the 128 MiB chips (v5e/v6e).
    return int(min(phys * 3 // 4, 100 << 20))


def _per_column_bytes(in_size, hid1, hid2, out_size):
    # VMEM bytes per batch column (lane): lane-padded f32 x tile + out tile (both
    # double-buffered by the pipeline) + in-kernel temporaries, with 1.5x Mosaic margin.
    x_col = _round_up(in_size, 128) * 4
    o_col = _round_up(out_size, 8) * 4
    act_col = 2 * in_size + 6 * hid1 + 6 * hid2 + 8 * out_size
    return (2 * (x_col + o_col) + act_col) * 3 // 2 + 64


def _vmem_limit_bytes(tb, in_size, hid1, hid2, out_size, budget):
    lane = lambda n: _round_up(max(n, 1), 128)
    sub = lambda n: _round_up(max(n, 1), 8)
    # "Resident" weights are still double-buffered by the pipeline -> count them twice.
    w_res = ((sub(hid1) * lane(in_size) + sub(hid2) * lane(hid1)) * 2        # bf16 W1, W2
             + (sub(hid1) + 2 * sub(hid2) + 2 * sub(out_size)) * lane(1) * 4  # biases / w3 col
             + sub(out_size) * lane(hid2) * 2)                                # w3 row (MXU path)
    est = 2 * w_res + tb * _per_column_bytes(in_size, hid1, hid2, out_size) + (4 << 20)
    return int(min(max(est, 16 << 20), budget))


def _choose_tb(b_pad, tb_target, in_size, hid1, hid2, out_size, budget):
    per_col = _per_column_bytes(in_size, hid1, hid2, out_size)
    cap = max(128, ((budget - (8 << 20)) // per_col) // 128 * 128)
    tb = max(128, min(_round_up(tb_target, 128), cap, b_pad))
    # Guarantee >= 2 grid steps whenever the batch allows, so on v7x both TensorCores
    # get a share of the "parallel" batch axis (extra ~0.35 us step elsewhere is noise).
    if pl.cdiv(b_pad, tb) < 2 and b_pad >= 256:
        tb = _round_up(pl.cdiv(b_pad, 2), 128)
    return tb


def _dense_nn_kernel(x_ref, w1_ref, b1_ref, w2_ref, b2_ref, w3_ref, b3_ref, o_ref,
                     *, layer3_on_mxu):
    # x_ref: (TB, in) f32 block of the original [B, in] input; weights are PyTorch-native
    # [out, in].  Batch moves onto lanes via the A @ B^T contraction below, so every
    # activation and the (1, TB) output tile are lane-dense.
    xb = x_ref[...].astype(jnp.bfloat16)                       # (TB, in) bf16 MXU feed

    # Layer 1: Linear + ReLU (dropout = identity in eval mode).  Contract both operands
    # on their last dim -> (hid1, TB); MXU with f32 accumulation, f32 epilogue.
    z1 = jax.lax.dot_general(
        w1_ref[...], xb, (((1,), (1,)), ((), ())),
        preferred_element_type=jnp.float32) + b1_ref[...]
    a1 = jnp.maximum(z1, 0.0).astype(jnp.bfloat16)             # fused bias+ReLU+bf16 cast

    # Layer 2: Linear + ReLU.
    z2 = jnp.dot(w2_ref[...], a1,
                 preferred_element_type=jnp.float32) + b2_ref[...]
    a2 = jnp.maximum(z2, 0.0)                                  # (hid2, TB) f32

    # Layer 3 (hid2 -> 1): execution unit chosen per TPU generation.
    if layer3_on_mxu:
        # v6e/v7x: idle MXU, keep the 2 XLUs free.  w3_ref is a (1, hid2) bf16 row.
        z3 = jnp.dot(w3_ref[...], a2.astype(jnp.bfloat16),
                     preferred_element_type=jnp.float32) + b3_ref[...]
    else:
        # v5e: VPU multiply + cross-sublane reduce.  w3_ref is a (hid2, 1) f32 column.
        z3 = jnp.sum(a2 * w3_ref[...], axis=0, keepdims=True) + b3_ref[...]

    o_ref[...] = jax.nn.sigmoid(z3).astype(o_ref.dtype)        # lane-dense (1, TB) store


def dense_nn_forward(x, params, *, tb=8192):
    """x: [B, in_size] float32 (PyTorch layout).  params: see init_params."""
    B, in_size = x.shape
    w1 = params["w1"].astype(jnp.bfloat16)      # (hid1, in)
    w2 = params["w2"].astype(jnp.bfloat16)      # (hid2, hid1)
    b1 = params["b1"].astype(jnp.float32)       # (hid1, 1)
    b2 = params["b2"].astype(jnp.float32)       # (hid2, 1)
    b3 = params["b3"].astype(jnp.float32)       # (1, 1)
    hid1, hid2 = w1.shape[0], w2.shape[0]
    out_size = b3.shape[0]
    assert out_size == 1, "layer-3 paths assume out_size == 1"

    layer3_on_mxu = _layer3_on_mxu()
    if layer3_on_mxu:
        w3 = params["w3"].T.astype(jnp.bfloat16)   # (1, hid2) row for the MXU path
    else:
        w3 = params["w3"].astype(jnp.float32)      # (hid2, 1) column for the VPU reduce

    budget = _vmem_budget_bytes()
    B_pad = _round_up(B, 128)                      # lane granularity only (<= 127 rows)
    TB = _choose_tb(B_pad, tb, in_size, hid1, hid2, out_size, budget)
    steps = pl.cdiv(B_pad, TB)                     # ragged last tile handled by Pallas

    x_in = x if B_pad == B else jnp.pad(x, ((0, B_pad - B), (0, 0)))

    def resident(shape):
        # Same block every grid step -> stays VMEM-resident (no per-step re-DMA).
        return pl.BlockSpec(shape, lambda i: (0, 0))

    weight_bytes = (2 * (hid1 * in_size + hid2 * hid1 + hid2 * out_size)
                    + 4 * (hid1 + hid2 + out_size))
    cost = pl.CostEstimate(
        flops=2 * B_pad * (in_size * hid1 + hid1 * hid2 + hid2 * out_size),
        transcendentals=B_pad * out_size,                       # sigmoid
        bytes_accessed=4 * B_pad * in_size + 4 * B_pad * out_size + weight_bytes,
    )

    out_t = pl.pallas_call(
        functools.partial(_dense_nn_kernel, layer3_on_mxu=layer3_on_mxu),
        out_shape=jax.ShapeDtypeStruct((out_size, B_pad), jnp.float32),
        grid=(steps,),
        in_specs=[
            pl.BlockSpec((TB, in_size), lambda i: (i, 0)),      # streamed activation tile
            resident(w1.shape), resident(b1.shape),
            resident(w2.shape), resident(b2.shape),
            resident(w3.shape), resident(b3.shape),
        ],
        out_specs=pl.BlockSpec((out_size, TB), lambda i: (0, i)),
        compiler_params=pltpu.CompilerParams(
            dimension_semantics=("parallel",),
            vmem_limit_bytes=_vmem_limit_bytes(TB, in_size, hid1, hid2, out_size, budget),
        ),
        cost_estimate=cost,
    )(x_in, w1, b1, w2, b2, w3, b3)

    return out_t[:, :B].T                                       # (B, out_size) f32


def init_params(key, in_size, hid1_size, hid2_size, out_size):
    """Deterministic init mirroring nn.Linear ([out, in] weights, column biases)."""
    ks = jax.random.split(key, 6)

    def lin(kw, kb, fan_in, fan_out):
        bound = 1.0 / (fan_in ** 0.5)
        w = jax.random.uniform(kw, (fan_out, fan_in), jnp.float32, -bound, bound)
        b = jax.random.uniform(kb, (fan_out, 1), jnp.float32, -bound, bound)
        return w, b

    w1, b1 = lin(ks[0], ks[1], in_size, hid1_size)
    w2, b2 = lin(ks[2], ks[3], hid1_size, hid2_size)
    w3, b3 = lin(ks[4], ks[5], hid2_size, out_size)
    # w3 stored as a (hid2, out) column; the wrapper re-lays it out per layer-3 path.
    return {"w1": w1, "b1": b1, "w2": w2, "b2": b2, "w3": w3.T, "b3": b3}


if __name__ == "__main__":
    B, in_size, hid1, hid2, out_size = 8, 32, 64, 32, 1
    key = jax.random.PRNGKey(0)
    kx, kp = jax.random.split(key)
    x = jax.random.normal(kx, (B, in_size), jnp.float32)
    params = init_params(kp, in_size, hid1, hid2, out_size)

    out = dense_nn_forward(x, params)
    out = jax.block_until_ready(out)

    # Reference at matching precision (bf16 storage, f32 accumulate; eval-mode dropout = id).
    rt = lambda a: a.astype(jnp.bfloat16).astype(jnp.float32)
    xb, w1b, w2b = rt(x), rt(params["w1"]), rt(params["w2"])
    a1 = rt(jnp.maximum(xb @ w1b.T + params["b1"].T, 0.0))
    a2 = jnp.maximum(a1 @ w2b.T + params["b2"].T, 0.0)
    if _layer3_on_mxu():
        z3 = rt(a2) @ rt(params["w3"]) + params["b3"].T
    else:
        z3 = a2 @ params["w3"] + params["b3"].T
    ref = jax.nn.sigmoid(z3)

    assert out.shape == (B, out_size)
    assert jnp.allclose(out, ref, atol=2e-3), "mismatch vs reference"

    print("KERNEL_OK")
</pallas_src>

<mosaic_0001>
module attributes {stable_mosaic.version = 11 : i64} {
  func.func @_dense_nn_kernel(%arg0: i32, %arg1: memref<128x32xf32, #tpu.memory_space<vmem>>, %arg2: memref<64x32xbf16, #tpu.memory_space<vmem>>, %arg3: memref<64x1xf32, #tpu.memory_space<vmem>>, %arg4: memref<32x64xbf16, #tpu.memory_space<vmem>>, %arg5: memref<32x1xf32, #tpu.memory_space<vmem>>, %arg6: memref<1x32xbf16, #tpu.memory_space<vmem>>, %arg7: memref<1x1xf32, #tpu.memory_space<vmem>>, %arg8: memref<1x128xf32, #tpu.memory_space<vmem>>) attributes {dimension_semantics = [#tpu.dimension_semantics<parallel>], iteration_bounds = array<i64: 1>, scalar_prefetch = 0 : i64, scratch_operands = 0 : i64, tpu.core_type = #tpu.core_type<tc>, window_params = [{transform_indices = @transform_0, window_bounds = array<i64: 128, 32>}, {pipeline_mode = #tpu.pipeline_mode<synchronous>, transform_indices = @transform_1, window_bounds = array<i64: 64, 32>}, {pipeline_mode = #tpu.pipeline_mode<synchronous>, transform_indices = @transform_2, window_bounds = array<i64: 64, 1>}, {pipeline_mode = #tpu.pipeline_mode<synchronous>, transform_indices = @transform_3, window_bounds = array<i64: 32, 64>}, {pipeline_mode = #tpu.pipeline_mode<synchronous>, transform_indices = @transform_4, window_bounds = array<i64: 32, 1>}, {pipeline_mode = #tpu.pipeline_mode<synchronous>, transform_indices = @transform_5, window_bounds = array<i64: 1, 32>}, {pipeline_mode = #tpu.pipeline_mode<synchronous>, transform_indices = @transform_6, window_bounds = array<i64: 1, 1>}, {transform_indices = @transform_7, window_bounds = array<i64: 1, 128>}]} {
    %c0 = arith.constant 0 : index
    %c0_0 = arith.constant 0 : index
    %0 = vector.load %arg1[%c0, %c0_0] : memref<128x32xf32, #tpu.memory_space<vmem>>, vector<128x32xf32>
    %1 = arith.truncf %0 : vector<128x32xf32> to vector<128x32xbf16>
    %c0_1 = arith.constant 0 : index
    %c0_2 = arith.constant 0 : index
    %2 = vector.load %arg2[%c0_1, %c0_2] : memref<64x32xbf16, #tpu.memory_space<vmem>>, vector<64x32xbf16>
    %cst = arith.constant dense<0.000000e+00> : vector<64x128xf32>
    %3 = tpu.matmul %2, %1, %cst {dimension_numbers = #tpu.dot_dimension_numbers<[1], [1], [0], [0], [0, 0, 1, 0], [], []>} : vector<64x32xbf16>, vector<128x32xbf16>, vector<64x128xf32> -> vector<64x128xf32>
    %c0_3 = arith.constant 0 : index
    %c0_4 = arith.constant 0 : index
    %4 = vector.load %arg3[%c0_3, %c0_4] : memref<64x1xf32, #tpu.memory_space<vmem>>, vector<64x1xf32>
    %5 = vector.broadcast %4 : vector<64x1xf32> to vector<64x128xf32>
    %6 = arith.addf %3, %5 : vector<64x128xf32>
    %cst_5 = arith.constant 0.000000e+00 : f32
    %7 = vector.broadcast %cst_5 : f32 to vector<64x128xf32>
    %8 = arith.maximumf %6, %7 : vector<64x128xf32>
    %9 = arith.truncf %8 : vector<64x128xf32> to vector<64x128xbf16>
    %c0_6 = arith.constant 0 : index
    %c0_7 = arith.constant 0 : index
    %10 = vector.load %arg4[%c0_6, %c0_7] : memref<32x64xbf16, #tpu.memory_space<vmem>>, vector<32x64xbf16>
    %cst_8 = arith.constant dense<0.000000e+00> : vector<32x128xf32>
    %11 = tpu.matmul %10, %9, %cst_8 {dimension_numbers = #tpu.dot_dimension_numbers<[1], [0], [0], [1], [0, 0, 1, 1], [], []>} : vector<32x64xbf16>, vector<64x128xbf16>, vector<32x128xf32> -> vector<32x128xf32>
    %c0_9 = arith.constant 0 : index
    %c0_10 = arith.constant 0 : index
    %12 = vector.load %arg5[%c0_9, %c0_10] : memref<32x1xf32, #tpu.memory_space<vmem>>, vector<32x1xf32>
    %13 = vector.broadcast %12 : vector<32x1xf32> to vector<32x128xf32>
    %14 = arith.addf %11, %13 : vector<32x128xf32>
    %cst_11 = arith.constant 0.000000e+00 : f32
    %15 = vector.broadcast %cst_11 : f32 to vector<32x128xf32>
    %16 = arith.maximumf %14, %15 : vector<32x128xf32>
    %c0_12 = arith.constant 0 : index
    %c0_13 = arith.constant 0 : index
    %17 = vector.load %arg6[%c0_12, %c0_13] : memref<1x32xbf16, #tpu.memory_space<vmem>>, vector<1x32xbf16>
    %18 = arith.truncf %16 : vector<32x128xf32> to vector<32x128xbf16>
    %cst_14 = arith.constant dense<0.000000e+00> : vector<1x128xf32>
    %19 = tpu.matmul %17, %18, %cst_14 {dimension_numbers = #tpu.dot_dimension_numbers<[1], [0], [0], [1], [0, 0, 1, 1], [], []>} : vector<1x32xbf16>, vector<32x128xbf16>, vector<1x128xf32> -> vector<1x128xf32>
    %c0_15 = arith.constant 0 : index
    %c0_16 = arith.constant 0 : index
    %20 = vector.load %arg7[%c0_15, %c0_16] : memref<1x1xf32, #tpu.memory_space<vmem>>, vector<1x1xf32>
    %21 = vector.broadcast %20 : vector<1x1xf32> to vector<1x128xf32>
    %22 = arith.addf %19, %21 : vector<1x128xf32>
    %23 = arith.negf %22 : vector<1x128xf32>
    %24 = math.exp %23 : vector<1x128xf32>
    %cst_17 = arith.constant 1.000000e+00 : f32
    %25 = vector.broadcast %cst_17 : f32 to vector<1x128xf32>
    %26 = arith.addf %25, %24 : vector<1x128xf32>
    %27 = arith.divf %25, %26 : vector<1x128xf32>
    %c0_18 = arith.constant 0 : index
    %c0_19 = arith.constant 0 : index
    %28 = vector.load %arg8[%c0_18, %c0_19] : memref<1x128xf32, #tpu.memory_space<vmem>>, vector<1x128xf32>
    tpu.vector_store %arg8[%c0_18, %c0_19], %27 {strides = array<i32>} : memref<1x128xf32, #tpu.memory_space<vmem>>, vector<1x128xf32>,
    return
  }
  func.func @transform_0(%arg0: i32) -> (i32, i32) {
    %c0_i32 = arith.constant 0 : i32
    %c0_i32_0 = arith.constant 0 : i32
    return %arg0, %c0_i32 : i32, i32
  }
  func.func @transform_1(%arg0: i32) -> (i32, i32) {
    %c0_i32 = arith.constant 0 : i32
    %c0_i32_0 = arith.constant 0 : i32
    %c0_i32_1 = arith.constant 0 : i32
    return %c0_i32, %c0_i32_0 : i32, i32
  }
  func.func @transform_2(%arg0: i32) -> (i32, i32) {
    %c0_i32 = arith.constant 0 : i32
    %c0_i32_0 = arith.constant 0 : i32
    %c0_i32_1 = arith.constant 0 : i32
    return %c0_i32, %c0_i32_0 : i32, i32
  }
  func.func @transform_3(%arg0: i32) -> (i32, i32) {
    %c0_i32 = arith.constant 0 : i32
    %c0_i32_0 = arith.constant 0 : i32
    %c0_i32_1 = arith.constant 0 : i32
    return %c0_i32, %c0_i32_0 : i32, i32
  }
  func.func @transform_4(%arg0: i32) -> (i32, i32) {
    %c0_i32 = arith.constant 0 : i32
    %c0_i32_0 = arith.constant 0 : i32
    %c0_i32_1 = arith.constant 0 : i32
    return %c0_i32, %c0_i32_0 : i32, i32
  }
  func.func @transform_5(%arg0: i32) -> (i32, i32) {
    %c0_i32 = arith.constant 0 : i32
    %c0_i32_0 = arith.constant 0 : i32
    %c0_i32_1 = arith.constant 0 : i32
    return %c0_i32, %c0_i32_0 : i32, i32
  }
  func.func @transform_6(%arg0: i32) -> (i32, i32) {
    %c0_i32 = arith.constant 0 : i32
    %c0_i32_0 = arith.constant 0 : i32
    %c0_i32_1 = arith.constant 0 : i32
    return %c0_i32, %c0_i32_0 : i32, i32
  }
  func.func @transform_7(%arg0: i32) -> (i32, i32) {
    %c0_i32 = arith.constant 0 : i32
    %c0_i32_0 = arith.constant 0 : i32
    return %c0_i32, %arg0 : i32, i32
  }
}

</mosaic_0001>

<llo_original>
// kernel: tpu_custom_call.1
$region0: #{tpu_custom_call.1}
  #allocation0 [shape = 'u32[]', space=smem, size = 0x4, offset = 0x4, fixed_abs, tag = 'smem constant byte address 0x4 - core index']
  #allocation1 [shape = 'u32[72,128]{1,0:T(1,128)}', space=vmem, size = 0x9000, scoped, tag = 'internal scratch']
  #allocation2 [shape = 'f32[1,1]{1,0:T(1,128)S(1)}', space=vmem, size = 0x200, scoped, tag = 'scoped memory for tpu_custom_call.1']
  %s0 = inlined_call_operand.vmem [shape: f32[128,32], index: 0, kind: input, shape index: {}]
  %s1 = inlined_call_operand.vmem [shape: bf16[64,32], index: 1, kind: input, shape index: {}]
  %s2 = inlined_call_operand.vmem [shape: f32[64,1], index: 2, kind: input, shape index: {}]
  %s3 = inlined_call_operand.vmem [shape: bf16[32,64], index: 3, kind: input, shape index: {}]
  %s4 = inlined_call_operand.vmem [shape: f32[32,1], index: 4, kind: input, shape index: {}]
  %s5 = inlined_call_operand.vmem [shape: bf16[1,32], index: 5, kind: input, shape index: {}]
  %s6 = inlined_call_operand.<no memory space> [shape: f32[1,1], index: 6, kind: input, shape index: {}]
  %s7 = inlined_call_operand.hbm [shape: f32[1,128], index: 7, kind: output, shape index: {}]
  %s8 = sld [smem:[#allocation0]]
  $region38: #{tpu_custom_call.1} parent=0
    _
  %s10 = ssub.s32 1, %s8
  %s11 = scalar_select 0, %s10, %s8
  %v12 = vstv %s6
  %13 = vst [vmem:[#allocation2] sm:$0x1] %v12
  $region1: #{tpu_custom_call.1} parent=0
    #allocation3 [shape = 'u8[512]{0}', space=vmem, size = 0x400, scoped, tag = 'output window, operand 0, single buffered']
    #allocation4 [shape = 's32[1]{0}', space=sflag, size = 0x4, scoped, tag = 'scoped memory for tpu_custom_call.1']
    %14 = vsyncpa [#allocation4], 0
    // Predicated region
    $region2: #{tpu_custom_call.1} parent=1 // pred_check
      _
    $region3: #{tpu_custom_call.1} parent=1 // pred_check_branch
      %16 = sbr.rel (0) target = $region5
    $region4: #{tpu_custom_call.1} parent=1 // pred_region
      _
    $region5: #{tpu_custom_call.1} parent=1 // pred_fallthru
      _
    // Predicated region
    $region6: #{tpu_custom_call.1} parent=1 // pred_check
      _
    $region7: #{tpu_custom_call.1} parent=1 // pred_check_branch
      %18 = sbr.rel (0) target = $region9
    $region8: #{tpu_custom_call.1} parent=1 // pred_region
      _
    $region9: #{tpu_custom_call.1} parent=1 // pred_fallthru
      _
    // Predicated region
    $region10: #{tpu_custom_call.1} parent=1 // pred_check
      _
    $region11: #{tpu_custom_call.1} parent=1 // pred_check_branch
      %20 = sbr.rel (0) target = $region13
    $region12: #{tpu_custom_call.1} parent=1 // pred_region
      _
    $region13: #{tpu_custom_call.1} parent=1 // pred_fallthru
      _
    // Predicated region
    $region14: #{tpu_custom_call.1} parent=1 // pred_check
      _
    $region15: #{tpu_custom_call.1} parent=1 // pred_check_branch
      %22 = sbr.rel (0) target = $region17
    $region16: #{tpu_custom_call.1} parent=1 // pred_region
      _
    $region17: #{tpu_custom_call.1} parent=1 // pred_fallthru
      _
    // Predicated region
    $region18: #{tpu_custom_call.1} parent=1 // pred_check
      _
    $region19: #{tpu_custom_call.1} parent=1 // pred_check_branch
      %24 = sbr.rel (0) target = $region21
    $region20: #{tpu_custom_call.1} parent=1 // pred_region
      _
    $region21: #{tpu_custom_call.1} parent=1 // pred_fallthru
      _
    // Predicated region
    $region22: #{tpu_custom_call.1} parent=1 // pred_check
      _
    $region23: #{tpu_custom_call.1} parent=1 // pred_check_branch
      %26 = sbr.rel (0) target = $region25
    $region24: #{tpu_custom_call.1} parent=1 // pred_region
      _
    $region25: #{tpu_custom_call.1} parent=1 // pred_fallthru
      _
    // Predicated region
    $region26: #{tpu_custom_call.1} parent=1 // pred_check
      _
    $region27: #{tpu_custom_call.1} parent=1 // pred_check_branch
      %28 = sbr.rel (0) target = $region29
    $region28: #{tpu_custom_call.1} parent=1 // pred_region
      _
    $region29: #{tpu_custom_call.1} parent=1 // pred_fallthru
      _
    %v30 = vld [vmem:[%s0] sm:$0xff]
    %v31 = vld [vmem:[%s0 + $0x8] sm:$0xff]
    %v32 = vld [vmem:[%s0 + $0x10] sm:$0xff]
    %v33 = vld [vmem:[%s0 + $0x18] sm:$0xff]
    %v34 = vld [vmem:[%s0 + $0x20] sm:$0xff]
    %v35 = vld [vmem:[%s0 + $0x28] sm:$0xff]
    %v36 = vld [vmem:[%s0 + $0x30] sm:$0xff]
    %v37 = vld [vmem:[%s0 + $0x38] sm:$0xff]
    %v38 = vld [vmem:[%s0 + $0x40] sm:$0xff]
    %v39 = vld [vmem:[%s0 + $0x48] sm:$0xff]
    %v40 = vld [vmem:[%s0 + $0x50] sm:$0xff]
    %v41 = vld [vmem:[%s0 + $0x58] sm:$0xff]
    %v42 = vld [vmem:[%s0 + $0x60] sm:$0xff]
    %v43 = vld [vmem:[%s0 + $0x68] sm:$0xff]
    %v44 = vld [vmem:[%s0 + $0x70] sm:$0xff]
    %v45 = vld [vmem:[%s0 + $0x78] sm:$0xff]
    %v46 = vpack.c.bf16 %v31, %v30
    %v47 = vpack.c.bf16 %v33, %v32
    %v48 = vpack.c.bf16 %v35, %v34
    %v49 = vpack.c.bf16 %v37, %v36
    %v50 = vpack.c.bf16 %v39, %v38
    %v51 = vpack.c.bf16 %v41, %v40
    %v52 = vpack.c.bf16 %v43, %v42
    %v53 = vpack.c.bf16 %v45, %v44
    %v54 = vld [vmem:[%s1] sm:$0xf]
    %v55 = vld [vmem:[%s1 + $0x4] sm:$0xf]
    %v56 = vld [vmem:[%s1 + $0x8] sm:$0xf]
    %v57 = vld [vmem:[%s1 + $0xc] sm:$0xf]
    %v58 = vld [vmem:[%s1 + $0x10] sm:$0xf]
    %v59 = vld [vmem:[%s1 + $0x14] sm:$0xf]
    %v60 = vld [vmem:[%s1 + $0x18] sm:$0xf]
    %v61 = vld [vmem:[%s1 + $0x1c] sm:$0xf]
    %v62 = vld [vmem:[%s2] sm:$0xff]
    %v63 = vld [vmem:[%s2 + $0x8] sm:$0xff]
    %v64 = vld [vmem:[%s2 + $0x10] sm:$0xff]
    %v65 = vld [vmem:[%s2 + $0x18] sm:$0xff]
    %v66 = vld [vmem:[%s2 + $0x20] sm:$0xff]
    %v67 = vld [vmem:[%s2 + $0x28] sm:$0xff]
    %v68 = vld [vmem:[%s2 + $0x30] sm:$0xff]
    %v69 = vld [vmem:[%s2 + $0x38] sm:$0xff]
    %71 = vset.pattern.permute.xlu0 0
    %72 = vperm.xlu0 %71, %v62
    %v73 = vpop.permute.xlu0 %72
    %76 = vset.pattern.permute.xlu0 0
    %77 = vperm.xlu0 %76, %v63
    %v78 = vpop.permute.xlu0 %77
    %81 = vset.pattern.permute.xlu0 0
    %82 = vperm.xlu0 %81, %v64
    %v83 = vpop.permute.xlu0 %82
    %86 = vset.pattern.permute.xlu0 0
    %87 = vperm.xlu0 %86, %v65
    %v88 = vpop.permute.xlu0 %87
    %91 = vset.pattern.permute.xlu0 0
    %92 = vperm.xlu0 %91, %v66
    %v93 = vpop.permute.xlu0 %92
    %96 = vset.pattern.permute.xlu0 0
    %97 = vperm.xlu0 %96, %v67
    %v98 = vpop.permute.xlu0 %97
    %101 = vset.pattern.permute.xlu0 0
    %102 = vperm.xlu0 %101, %v68
    %v103 = vpop.permute.xlu0 %102
    %106 = vset.pattern.permute.xlu0 0
    %107 = vperm.xlu0 %106, %v69
    %v108 = vpop.permute.xlu0 %107
    %v118 = vunpack.c.l.b16 %v54
    %v119 = vunpack.c.l.b16 %v55
    %v120 = vunpack.c.l.b16 %v56
    %v121 = vunpack.c.l.b16 %v57
    %v122 = vunpack.c.l.b16 %v58
    %v123 = vunpack.c.l.b16 %v59
    %v124 = vunpack.c.l.b16 %v60
    %v125 = vunpack.c.l.b16 %v61
    %v126 = vpack.c.b16 %v119, %v118
    %v127 = vpack.c.b16 %v121, %v120
    %v128 = vpack.c.b16 %v123, %v122
    %v129 = vpack.c.b16 %v125, %v124
    %vm130 = vcmask 261120
    %v132 = vsel %vm130, %v126, 0
    %v135 = vsel %vm130, %v127, 0
    %v138 = vsel %vm130, %v128, 0
    %v141 = vsel %vm130, %v129, 0
    %v144 = vsel %vm130, %v46, 0
    %v147 = vsel %vm130, %v47, 0
    %v150 = vsel %vm130, %v48, 0
    %v153 = vsel %vm130, %v49, 0
    %v156 = vsel %vm130, %v50, 0
    %v159 = vsel %vm130, %v51, 0
    %v162 = vsel %vm130, %v52, 0
    %v165 = vsel %vm130, %v53, 0
    %167 = vmatpush.bf16.xpose.msra.mxu0 %v165
    %168 = vmatpush.bf16.xpose.msra.mxu0 %v162
    %169 = vmatpush.bf16.xpose.msra.mxu0 %v159
    %170 = vmatpush.bf16.xpose.msra.mxu0 %v156
    %171 = vmatpush.bf16.xpose.msra.mxu0 %v153
    %172 = vmatpush.bf16.xpose.msra.mxu0 %v150
    %173 = vmatpush.bf16.xpose.msra.mxu0 %v147
    %174 = vmatpush.bf16.xpose.msra.mxu0 %v144
    %175 = vmatmul.bf16.gmra.mxu0 %v132
    %v176 = vpop.f32.mrf.mxu0
    %v177 = vadd.f32 %v73, %v176
    %v178 = vpop.f32.mrf.mxu0
    %v179 = vadd.f32 %v78, %v178
    %180 = vmatmul.bf16.gmra.mxu0 %v135
    %v181 = vpop.f32.mrf.mxu0
    %v182 = vadd.f32 %v83, %v181
    %v183 = vpop.f32.mrf.mxu0
    %v184 = vadd.f32 %v88, %v183
    %185 = vmatmul.bf16.gmra.mxu0 %v138
    %v186 = vpop.f32.mrf.mxu0
    %v187 = vadd.f32 %v93, %v186
    %v188 = vpop.f32.mrf.mxu0
    %v189 = vadd.f32 %v98, %v188
    %190 = vmatmul.bf16.gmra.mxu0 %v141
    %v191 = vpop.f32.mrf.mxu0
    %v192 = vadd.f32 %v103, %v191
    %v193 = vpop.f32.mrf.mxu0
    %v194 = vadd.f32 %v108, %v193
    %195 = vdwg.mxu0
    %v196 = vmax.f32 %v177, 0.0
    %v197 = vmax.f32 %v179, 0.0
    %v198 = vmax.f32 %v182, 0.0
    %v199 = vmax.f32 %v184, 0.0
    %v200 = vmax.f32 %v187, 0.0
    %v201 = vmax.f32 %v189, 0.0
    %v202 = vmax.f32 %v192, 0.0
    %v203 = vmax.f32 %v194, 0.0
    %v204 = vpack.c.bf16 %v197, %v196
    %v205 = vpack.c.bf16 %v199, %v198
    %v206 = vpack.c.bf16 %v201, %v200
    %v207 = vpack.c.bf16 %v203, %v202
    %v208 = vld [vmem:[%s3] sm:$0xf]
    %v209 = vld [vmem:[%s3 + $0x4] sm:$0xf]
    %v210 = vld [vmem:[%s3 + $0x8] sm:$0xf]
    %v211 = vld [vmem:[%s3 + $0xc] sm:$0xf]
    %v212 = vld [vmem:[%s4] sm:$0xff]
    %v213 = vld [vmem:[%s4 + $0x8] sm:$0xff]
    %v214 = vld [vmem:[%s4 + $0x10] sm:$0xff]
    %v215 = vld [vmem:[%s4 + $0x18] sm:$0xff]
    %217 = vset.pattern.permute.xlu0 0
    %218 = vperm.xlu0 %217, %v212
    %v219 = vpop.permute.xlu0 %218
    %222 = vset.pattern.permute.xlu0 0
    %223 = vperm.xlu0 %222, %v213
    %v224 = vpop.permute.xlu0 %223
    %227 = vset.pattern.permute.xlu0 0
    %228 = vperm.xlu0 %227, %v214
    %v229 = vpop.permute.xlu0 %228
    %232 = vset.pattern.permute.xlu0 0
    %233 = vperm.xlu0 %232, %v215
    %v234 = vpop.permute.xlu0 %233
    %v240 = vunpack.c.l.b16 %v208
    %v241 = vunpack.c.l.b16 %v209
    %v242 = vunpack.c.l.b16 %v210
    %v243 = vunpack.c.l.b16 %v211
    %v244 = vpack.c.b16 %v241, %v240
    %v245 = vpack.c.b16 %v243, %v242
    %vm246 = vcmask 523264
    %v248 = vsel %vm246, %v244, 0
    %v251 = vsel %vm246, %v245, 0
    %253 = vmatpush.bf16.msra.mxu0 0
    %254 = vmatpush.bf16.msra.mxu0 0
    %255 = vmatpush.bf16.msra.mxu0 0
    %256 = vmatpush.bf16.msra.mxu0 0
    %257 = vmatpush.bf16.msra.mxu0 %v207
    %258 = vmatpush.bf16.msra.mxu0 %v206
    %259 = vmatpush.bf16.msra.mxu0 %v205
    %260 = vmatpush.bf16.msra.mxu0 %v204
    %261 = vmatmul.bf16.gmra.mxu0 %v248
    %v262 = vpop.f32.mrf.mxu0
    %v263 = vadd.f32 %v219, %v262
    %v264 = vpop.f32.mrf.mxu0
    %v265 = vadd.f32 %v224, %v264
    %266 = vmatmul.bf16.gmra.mxu0 %v251
    %v267 = vpop.f32.mrf.mxu0
    %v268 = vadd.f32 %v229, %v267
    %v269 = vpop.f32.mrf.mxu0
    %v270 = vadd.f32 %v234, %v269
    %271 = vdwg.mxu0
    %v272 = vmax.f32 %v263, 0.0
    %v273 = vmax.f32 %v265, 0.0
    %v274 = vmax.f32 %v268, 0.0
    %v275 = vmax.f32 %v270, 0.0
    %v276 = vld [vmem:[%s5] sm:$0x1]
    %v277 = vpack.c.bf16 %v273, %v272
    %v278 = vpack.c.bf16 %v275, %v274
    %v279 = vld [vmem:[#allocation2] sm:$0x1]
    %281 = vset.pattern.permute.xlu0 0
    %282 = vperm.xlu0 %281, %v279
    %v283 = vpop.permute.xlu0 %282
    %v285 = vperm.slane %v283, 0
    %v287 = vsel %vm130, %v276, 0
    %289 = vmatpush.bf16.msra.mxu0 0
    %290 = vmatpush.bf16.msra.mxu0 0
    %291 = vmatpush.bf16.msra.mxu0 0
    %292 = vmatpush.bf16.msra.mxu0 0
    %293 = vmatpush.bf16.msra.mxu0 0
    %294 = vmatpush.bf16.msra.mxu0 0
    %295 = vmatpush.bf16.msra.mxu0 %v278
    %296 = vmatpush.bf16.msra.mxu0 %v277
    %297 = vmatmul.bf16.gmra.mxu0 %v287
    %v298 = vpop.f32.mrf.mxu0
    %v299 = vadd.f32 %v285, %v298
    %v300 = vpop.f32.mrf.mxu0
    %301 = vdwg.mxu0
    %v302 = vxor.u32 %v299, 2147483648
    %v303 = vmul.f32 %v302, 1.442695
    %v304 = vpow.pop %v303
    %v305 = vadd.f32 %v304, 1.0
    %v306 = vrcp.pop %v305
    %v307 = vmul.f32 %v305, %v306
    %v308 = vsub.f32 1.0, %v307
    %v309 = vmul.f32 %v306, %v308
    %v310 = vadd.f32 %v306, %v309
    %vm311 = vweird.f32 %v305
    %vm312 = vweird.f32 %v306
    %vm313 = vmor %vm311, %vm312
    %v314 = vsel %vm313, %v306, %v310
    %v315 = vand.u32 2147483647, %v305
    %vm316 = vcmp.eq.f32.partialorder %v315, 8.507059e+37
    %v317 = vand.u32 %v305, 2147483648
    %v318 = vor.u32 1.1754944e-38, %v317
    %v319 = vsel %vm316, %v318, %v314
    %v320 = vmul.f32 1.0, %v319
    %321 = vst [vmem:[#allocation3] sm:$0x1] %v320
    // Predicated region
    $region30: #{tpu_custom_call.1} parent=1 // pred_check
      _
    $region31: #{tpu_custom_call.1} parent=1 // pred_check_branch
      %323 = sbr.rel (0) target = $region33
    $region32: #{tpu_custom_call.1} parent=1 // pred_region
      %325 = vsyncadd [#allocation4], 0
      %s327 = sshll.u32 [#allocation3], 4
      %s328 = int_to_ptr.vmem [resolvable:$true] %s327
      %s329 = sshll.u32 %s7, 4
      %s330 = int_to_ptr.hbm [resolvable:$true] %s329
      %332 = dma.vmem_to_hbm [thread:$0]  %s328, 16, %s330, [#allocation4]
    $region33: #{tpu_custom_call.1} parent=1 // pred_fallthru
      _
    // Predicated region
    $region34: #{tpu_custom_call.1} parent=1 // pred_check
      _
    $region35: #{tpu_custom_call.1} parent=1 // pred_check_branch
      %334 = sbr.rel (0) target = $region37
    $region36: #{tpu_custom_call.1} parent=1 // pred_region
      %336 = dma.done [#allocation4], 16
    $region37: #{tpu_custom_call.1} parent=1 // pred_fallthru
      _
    %337 = vsyncpa [#allocation4], 1

</llo_original>
